<compile_context>
chip_gen: v5e
topology: v5e:2x2
jax: 0.10.0
libtpu: 0.0.40
codegen_flags: <defaults>
</compile_context>

<pallas_src>
import functools

import jax
import jax.numpy as jnp
from jax.experimental import pallas as pl
from jax.experimental.pallas import tpu as pltpu


def _masked_l1_kernel(mask_ref, a_ref, b_ref, out_ref, *,
                      n_planes, plane_block, hw, hw_block, bf16_diff):
    """One grid step = (plane_block, hw_block) tile of the flattened tensor."""
    a = a_ref[...]
    b = b_ref[...]
    if bf16_diff:
        # bf16 sub/abs on the VPU (halved vreg traffic); f32 only for the
        # mask-multiply / accumulate.  (On v5e Mosaic upcasts internally.)
        d = jnp.abs(a - b).astype(jnp.float32)
    else:
        d = jnp.abs(a.astype(jnp.float32) - b.astype(jnp.float32))
    vals = d * mask_ref[...].astype(jnp.float32)       # (P, HWB) * (1, HWB)

    def reduce_to_out(x):
        # Two-stage reduction: lane sums per row, then across rows.
        out_ref[...] = jnp.sum(jnp.sum(x, axis=-1, keepdims=True)).reshape(1, 1, 1, 1)

    has_plane_tail = (n_planes % plane_block) != 0
    has_hw_tail = (hw % hw_block) != 0

    if not has_plane_tail and not has_hw_tail:
        reduce_to_out(vals)
        return

    # Grid is (hw_chunks, plane_blocks): axis 0 = j (outer), axis 1 = i (inner).
    j = pl.program_id(0)
    i = pl.program_id(1)
    tails = []
    if has_plane_tail:
        tails.append(i == pl.num_programs(1) - 1)
    if has_hw_tail:
        tails.append(j == pl.num_programs(0) - 1)
    is_tail = tails[0] if len(tails) == 1 else jnp.logical_or(*tails)

    @pl.when(jnp.logical_not(is_tail))
    def _():
        reduce_to_out(vals)

    @pl.when(is_tail)
    def _():
        # Out-of-range rows/lanes hold unspecified (possibly non-finite)
        # padding, so select (where), don't multiply.
        masked = vals
        if has_plane_tail:
            row = jax.lax.broadcasted_iota(jnp.int32, masked.shape, 0)
            masked = jnp.where(i * plane_block + row < n_planes, masked, 0.0)
        if has_hw_tail:
            col = jax.lax.broadcasted_iota(jnp.int32, masked.shape, 1)
            masked = jnp.where(j * hw_block + col < hw, masked, 0.0)
        reduce_to_out(masked)


def _choose_blocks(n_planes, hw, itemsize, *, target_bytes=6 << 20,
                   plane_block=None, hw_block=None):
    """Pick (plane_block, hw_block) so one input tile is <= target_bytes.

    Rules: plane_block is a multiple of the sublane packing (8 f32 / 16 bf16)
    or equals n_planes; hw_block is a multiple of 128 or equals hw.  If even a
    sublane-high stripe of full planes overshoots the target, the hw (lane)
    axis is tiled instead of inflating plane_block.
    """
    sublane = max(1, 32 // itemsize)          # 8 for f32, 16 for bf16, 32 for int8
    plane_bytes = hw * itemsize

    if plane_block is None and hw_block is None:
        if sublane * plane_bytes > target_bytes:
            # Large planes: tile the lane axis, keep plane_block minimal.
            plane_block = min(sublane, n_planes)
            hw_block = (target_bytes // max(plane_block * itemsize, 1)) // 128 * 128
            hw_block = int(min(max(hw_block, 128), hw))
        else:
            hw_block = hw
            p = target_bytes // max(plane_bytes, 1)
            if p >= n_planes:
                plane_block = n_planes
                # Whole tensor in one step -> split so the parallel grid can
                # use both v7x TensorCores (even 2-way split when possible).
                if n_planes >= 2 * sublane:
                    half = n_planes // 2
                    plane_block = ((half + sublane - 1) // sublane) * sublane
            else:
                plane_block = min(n_planes, max(sublane, (p // sublane) * sublane))
    else:
        if plane_block is None:
            plane_block = min(n_planes, sublane)
        if hw_block is None:
            hw_block = hw

    plane_block = int(min(plane_block, n_planes))
    hw_block = int(min(hw_block, hw))
    return plane_block, hw_block


def masked_l1_loss(gt, est, non_valid_border_size=0, *,
                   plane_block=None, hw_block=None, target_bytes=6 << 20):
    """MaskedL1Loss with the valid-center mask: sum(|gt-est|*mask) / mask.sum()."""
    assert gt.shape == est.shape, (gt.shape, est.shape)
    shape = est.shape
    H, W = int(shape[-2]), int(shape[-1])
    n_planes = 1
    for s in shape[:-2]:
        n_planes *= int(s)
    hw = H * W
    b = int(non_valid_border_size)
    inner_h, inner_w = max(H - 2 * b, 0), max(W - 2 * b, 0)
    denom = n_planes * inner_h * inner_w
    assert denom > 0, "valid-center mask is empty"
    # TODO(synk): MaskedL1Loss's exact reduction convention is assumed to be
    # sum(|gt-est|*mask)/mask.sum(); any tiny eps added to the denominator in
    # the original repo is not reproduced.

    # Free (bitcast) reshapes -- no extra HBM pass, no host-side padding.
    gt2 = gt.reshape(n_planes, hw)
    est2 = est.reshape(n_planes, hw)

    # Static interior (valid-center) weight row, (1, H*W), bf16 (0/1 exact),
    # DMA'd once per hw-chunk (outer grid axis).
    row = jax.lax.broadcasted_iota(jnp.int32, (H, W), 0)
    col = jax.lax.broadcasted_iota(jnp.int32, (H, W), 1)
    interior = ((row >= b) & (row < H - b) & (col >= b) & (col < W - b))
    interior = interior.astype(jnp.bfloat16).reshape(1, hw)

    itemsize = jnp.dtype(est.dtype).itemsize
    plane_block, hw_block = _choose_blocks(
        n_planes, hw, itemsize, target_bytes=target_bytes,
        plane_block=plane_block, hw_block=hw_block)
    n_pblocks = int(pl.cdiv(n_planes, plane_block))
    n_hwblocks = int(pl.cdiv(hw, hw_block))

    # VMEM: 2 inputs x 2 pipeline buffers x tile + double-buffered bf16 mask
    # + slack for the tiny outputs; add fixed headroom, cap well inside v7x's
    # 64 MiB/TC.  By construction block_bytes <= target_bytes, so the cap
    # never clips below the true requirement.
    block_bytes = plane_block * hw_block * itemsize
    need = 2 * 2 * block_bytes + 2 * hw_block * 2 + (1 << 20)
    vmem_limit = int(min(max(need + (8 << 20), 32 << 20), 56 << 20))

    bf16_diff = (est.dtype == jnp.bfloat16) and (gt.dtype == jnp.bfloat16)

    kernel = functools.partial(
        _masked_l1_kernel, n_planes=n_planes, plane_block=plane_block,
        hw=hw, hw_block=hw_block, bf16_diff=bf16_diff)

    partials = pl.pallas_call(
        kernel,
        out_shape=jax.ShapeDtypeStruct((n_pblocks, n_hwblocks, 1, 1), jnp.float32),
        grid_spec=pltpu.PrefetchScalarGridSpec(
            num_scalar_prefetch=0,
            # hw-chunk axis OUTER so the mask's block index is constant across
            # the inner plane loop (fetched once per chunk, not per step).
            grid=(n_hwblocks, n_pblocks),
            in_specs=[
                pl.BlockSpec((1, hw_block), lambda j, i: (0, j)),              # interior mask
                pl.BlockSpec((plane_block, hw_block), lambda j, i: (i, j)),    # gt
                pl.BlockSpec((plane_block, hw_block), lambda j, i: (i, j)),    # est
            ],
            out_specs=pl.BlockSpec((1, 1, 1, 1), lambda j, i: (i, j, 0, 0)),   # per-block partial
        ),
        compiler_params=pltpu.CompilerParams(
            dimension_semantics=("parallel", "parallel"),
            vmem_limit_bytes=vmem_limit,
        ),
    )(interior, gt2, est2)

    return jnp.sum(partials) / denom


def get_valid_mask_2(clean_image_estimate, non_valid_border_size):
    """Plain-JAX glue (off the hot path): ones with zeroed border, bool, est shape."""
    # TODO(synk): the BW2RGB / channel-slicing branch of the original
    # get_valid_mask_2 (mask channel count != estimate channel count) is not
    # reproduced; the mask is returned directly at the estimate's shape.
    # (A leaner variant would return only the (H, W) plane and defer the
    # broadcast to whoever consumes outputs_dict["valid_mask"].)
    b = int(non_valid_border_size)
    shape = clean_image_estimate.shape
    H, W = shape[-2], shape[-1]
    plane = jnp.zeros((H, W), jnp.float32).at[b:H - b, b:W - b].set(1.0)
    return jnp.broadcast_to(plane, shape).astype(jnp.bool_)


def loss_simple_forward(inputs_dict, outputs_dict, train_dict):
    """Mirror of Loss_Simple.forward: returns (total_loss, outputs_dict, inputs_dict)."""
    clean_image_estimate = outputs_dict["model_output"]
    gt_clean_image = inputs_dict["center_frame_original"]
    border = train_dict["non_valid_border_size"]
    valid_mask = get_valid_mask_2(clean_image_estimate, border)
    # MaskedL1Loss(gt, est, valid_mask); the 0/1 border mask is folded
    # analytically into the Pallas reduction (denominator is static).
    total_loss = masked_l1_loss(gt_clean_image, clean_image_estimate, border) * 1
    outputs_dict["valid_mask"] = valid_mask
    outputs_dict["total_loss"] = total_loss
    return total_loss, outputs_dict, inputs_dict


def _reference_masked_l1(gt, est, border):
    """Pure-JAX reference for the same masked L1 (sanity check)."""
    b = int(border)
    shape = est.shape
    H, W = shape[-2], shape[-1]
    m = jnp.zeros((H, W), jnp.float32).at[b:H - b, b:W - b].set(1.0)
    m = jnp.broadcast_to(m, shape)
    diff = jnp.abs(est - gt).astype(jnp.float32)   # diff in the input dtype (as torch does)
    return jnp.sum(diff * m) / jnp.sum(m)


if __name__ == "__main__":
    key = jax.random.PRNGKey(0)
    k1, k2, k3, k4, k5, k6 = jax.random.split(key, 6)

    # 1) 4D case: (B, C, H, W) f32, full Loss_Simple.forward path, single block.
    B, C, H, W = 2, 4, 16, 16
    model_output = jax.random.normal(k1, (B, C, H, W), jnp.float32)
    center_frame_original = jax.random.normal(k2, (B, C, H, W), jnp.float32)

    inputs_dict = {"center_frame_original": center_frame_original,
                   "center_frame_noisy": center_frame_original}
    outputs_dict = {"model_output": model_output}
    train_dict = {"non_valid_border_size": 2}

    total_loss, od, id_ = loss_simple_forward(inputs_dict, outputs_dict, train_dict)
    total_loss = jax.block_until_ready(total_loss)
    ref = _reference_masked_l1(center_frame_original, model_output, 2)
    assert jnp.allclose(total_loss, ref, rtol=1e-5, atol=1e-6), (total_loss, ref)
    assert od["valid_mask"].shape == (B, C, H, W)
    assert od["valid_mask"].dtype == jnp.bool_

    # 2) 5D case: (B, T, C, H, W) bf16, forced plane_block=16 -> 2 plane blocks
    #    with a ragged plane tail; exercises the bf16 diff path + parallel grid.
    B2, T2, C2 = 2, 4, 3
    est5 = jax.random.normal(k3, (B2, T2, C2, H, W), jnp.bfloat16)
    gt5 = jax.random.normal(k4, (B2, T2, C2, H, W), jnp.bfloat16)
    loss5 = jax.block_until_ready(masked_l1_loss(gt5, est5, 1, plane_block=16))
    ref5 = _reference_masked_l1(gt5, est5, 1)
    assert jnp.allclose(loss5, ref5, rtol=1e-4, atol=1e-5), (loss5, ref5)

    # 3) Lane-axis tiling with a ragged hw tail: W=18 (hw=288 not a multiple of
    #    128), forced hw_block=128 -> 3 hw chunks, last one masked.
    est3 = jax.random.normal(k5, (2, 3, 16, 18), jnp.float32)
    gt3 = jax.random.normal(k6, (2, 3, 16, 18), jnp.float32)
    loss3 = jax.block_until_ready(masked_l1_loss(gt3, est3, 2, hw_block=128))
    ref3 = _reference_masked_l1(gt3, est3, 2)
    assert jnp.allclose(loss3, ref3, rtol=1e-5, atol=1e-6), (loss3, ref3)

    print("KERNEL_OK")
</pallas_src>

<mosaic_0001>
module attributes {stable_mosaic.version = 11 : i64} {
  func.func @_masked_l1_kernel(%arg0: i32, %arg1: i32, %arg2: memref<1x256xbf16, #tpu.memory_space<vmem>>, %arg3: memref<8x256xf32, #tpu.memory_space<vmem>>, %arg4: memref<8x256xf32, #tpu.memory_space<vmem>>, %arg5: memref<1x1x1x1xf32, #tpu.memory_space<vmem>>) attributes {dimension_semantics = [#tpu.dimension_semantics<parallel>, #tpu.dimension_semantics<parallel>], iteration_bounds = array<i64: 1, 1>, scalar_prefetch = 0 : i64, scratch_operands = 0 : i64, tpu.core_type = #tpu.core_type<tc>, window_params = [{transform_indices = @transform_0, window_bounds = array<i64: 1, 256>}, {transform_indices = @transform_1, window_bounds = array<i64: 8, 256>}, {transform_indices = @transform_2, window_bounds = array<i64: 8, 256>}, {transform_indices = @transform_3, window_bounds = array<i64: 1, 1, 1, 1>}]} {
    %c0 = arith.constant 0 : index
    %c0_0 = arith.constant 0 : index
    %0 = vector.load %arg3[%c0, %c0_0] : memref<8x256xf32, #tpu.memory_space<vmem>>, vector<8x256xf32>
    %c0_1 = arith.constant 0 : index
    %c0_2 = arith.constant 0 : index
    %1 = vector.load %arg4[%c0_1, %c0_2] : memref<8x256xf32, #tpu.memory_space<vmem>>, vector<8x256xf32>
    %2 = arith.subf %0, %1 : vector<8x256xf32>
    %3 = math.absf %2 : vector<8x256xf32>
    %c0_3 = arith.constant 0 : index
    %c0_4 = arith.constant 0 : index
    %4 = vector.load %arg2[%c0_3, %c0_4] : memref<1x256xbf16, #tpu.memory_space<vmem>>, vector<1x256xbf16>
    %5 = arith.extf %4 : vector<1x256xbf16> to vector<1x256xf32>
    %6 = vector.broadcast %5 : vector<1x256xf32> to vector<8x256xf32>
    %7 = arith.mulf %3, %6 : vector<8x256xf32>
    %cst = arith.constant dense<0.000000e+00> : vector<8xf32>
    %8 = vector.multi_reduction <add>, %7, %cst [1] : vector<8x256xf32> to vector<8xf32>
    %9 = vector.shape_cast %8 : vector<8xf32> to vector<8x1xf32>
    %10 = vector.shape_cast %9 : vector<8x1xf32> to vector<1x8x1xf32>
    %cst_5 = arith.constant dense<0.000000e+00> : vector<1xf32>
    %11 = vector.multi_reduction <add>, %10, %cst_5 [1, 2] : vector<1x8x1xf32> to vector<1xf32>
    %12 = vector.shape_cast %11 : vector<1xf32> to vector<1x1x1xf32>
    %13 = vector.extract %12[0, 0, 0] : f32 from vector<1x1x1xf32>
    %14 = vector.broadcast %13 : f32 to vector<1x1x1x1xf32>
    %c0_6 = arith.constant 0 : index
    %c0_7 = arith.constant 0 : index
    %c0_8 = arith.constant 0 : index
    %c0_9 = arith.constant 0 : index
    %15 = vector.load %arg5[%c0_6, %c0_7, %c0_8, %c0_9] : memref<1x1x1x1xf32, #tpu.memory_space<vmem>>, vector<1x1x1x1xf32>
    tpu.vector_store %arg5[%c0_6, %c0_7, %c0_8, %c0_9], %14 {strides = array<i32>} : memref<1x1x1x1xf32, #tpu.memory_space<vmem>>, vector<1x1x1x1xf32>,
    return
  }
  func.func @transform_0(%arg0: i32, %arg1: i32) -> (i32, i32) {
    %c0_i32 = arith.constant 0 : i32
    %c0_i32_0 = arith.constant 0 : i32
    return %c0_i32, %arg0 : i32, i32
  }
  func.func @transform_1(%arg0: i32, %arg1: i32) -> (i32, i32) {
    %c0_i32 = arith.constant 0 : i32
    return %arg1, %arg0 : i32, i32
  }
  func.func @transform_2(%arg0: i32, %arg1: i32) -> (i32, i32) {
    %c0_i32 = arith.constant 0 : i32
    return %arg1, %arg0 : i32, i32
  }
  func.func @transform_3(%arg0: i32, %arg1: i32) -> (i32, i32, i32, i32) {
    %c0_i32 = arith.constant 0 : i32
    %c0_i32_0 = arith.constant 0 : i32
    %c0_i32_1 = arith.constant 0 : i32
    return %arg1, %arg0, %c0_i32, %c0_i32_0 : i32, i32, i32, i32
  }
}

</mosaic_0001>

<llo_original>
// kernel: tpu_custom_call.1
$region0: #{tpu_custom_call.1}
  #allocation0 [shape = 'u32[]', space=smem, size = 0x4, offset = 0x4, fixed_abs, tag = 'smem constant byte address 0x4 - core index']
  #allocation1 [shape = 'u32[72,128]{1,0:T(1,128)}', space=vmem, size = 0x9000, scoped, tag = 'internal scratch']
  %s0 = inlined_call_operand.hbm [shape: bf16[1,256], index: 0, kind: input, shape index: {}]
  %s1 = inlined_call_operand.hbm [shape: f32[8,256], index: 1, kind: input, shape index: {}]
  %s2 = inlined_call_operand.hbm [shape: f32[8,256], index: 2, kind: input, shape index: {}]
  %s3 = inlined_call_operand.hbm [shape: f32[1,1,1,1], index: 3, kind: output, shape index: {}]
  %s4 = sld [smem:[#allocation0]]
  $region34: #{tpu_custom_call.1} parent=0
    _
  %s6 = ssub.s32 1, %s4
  %s7 = scalar_select 0, %s6, %s4
  $region1: #{tpu_custom_call.1} parent=0
    #allocation2 [shape = 'u8[1024]{0}', space=vmem, size = 0x400, scoped, tag = 'input window, operand 0, single buffered']
    #allocation3 [shape = 's32[1]{0}', space=sflag, size = 0x4, scoped, tag = 'scoped memory for tpu_custom_call.1']
    #allocation4 [shape = 's32[1]{0}', space=sflag, size = 0x4, scoped, tag = 'scoped memory for tpu_custom_call.1']
    #allocation5 [shape = 'u8[8192]{0}', space=vmem, size = 0x2000, scoped, tag = 'input window, operand 1, single buffered']
    #allocation6 [shape = 's32[1]{0}', space=sflag, size = 0x4, scoped, tag = 'scoped memory for tpu_custom_call.1']
    #allocation7 [shape = 'u8[8192]{0}', space=vmem, size = 0x2000, scoped, tag = 'input window, operand 2, single buffered']
    #allocation8 [shape = 'u8[512]{0}', space=vmem, size = 0x400, scoped, tag = 'output window, operand 0, single buffered']
    %8 = vsyncpa [#allocation3], 0
    %9 = vsyncpa [#allocation6], 0
    %10 = vsyncpa [#allocation4], 0
    // Predicated region
    $region2: #{tpu_custom_call.1} parent=1 // pred_check
      _
    $region3: #{tpu_custom_call.1} parent=1 // pred_check_branch
      %12 = sbr.rel (0) target = $region5
    $region4: #{tpu_custom_call.1} parent=1 // pred_region
      %14 = vsyncadd [#allocation3], 0
      %s16 = sshll.u32 %s0, 4
      %s17 = int_to_ptr.hbm [resolvable:$true] %s16
      %s18 = sshll.u32 [#allocation2], 4
      %s19 = int_to_ptr.vmem [resolvable:$true] %s18
      %21 = dma.hbm_to_vmem [thread:$0]  %s17, 32, %s19, [#allocation3]
    $region5: #{tpu_custom_call.1} parent=1 // pred_fallthru
      _
    // Predicated region
    $region6: #{tpu_custom_call.1} parent=1 // pred_check
      _
    $region7: #{tpu_custom_call.1} parent=1 // pred_check_branch
      %23 = sbr.rel (0) target = $region9
    $region8: #{tpu_custom_call.1} parent=1 // pred_region
      %25 = vsyncadd [#allocation6], 0
      %s27 = sshll.u32 %s1, 4
      %s28 = int_to_ptr.hbm [resolvable:$true] %s27
      %s29 = sshll.u32 [#allocation5], 4
      %s30 = int_to_ptr.vmem [resolvable:$true] %s29
      %32 = dma.hbm_to_vmem [thread:$0]  %s28, 256, %s30, [#allocation6]
    $region9: #{tpu_custom_call.1} parent=1 // pred_fallthru
      _
    // Predicated region
    $region10: #{tpu_custom_call.1} parent=1 // pred_check
      _
    $region11: #{tpu_custom_call.1} parent=1 // pred_check_branch
      %34 = sbr.rel (0) target = $region13
    $region12: #{tpu_custom_call.1} parent=1 // pred_region
      %36 = vsyncadd [#allocation6], 0
      %s38 = sshll.u32 %s2, 4
      %s39 = int_to_ptr.hbm [resolvable:$true] %s38
      %s40 = sshll.u32 [#allocation7], 4
      %s41 = int_to_ptr.vmem [resolvable:$true] %s40
      %43 = dma.hbm_to_vmem [thread:$0]  %s39, 256, %s41, [#allocation6]
    $region13: #{tpu_custom_call.1} parent=1 // pred_fallthru
      _
    // Predicated region
    $region14: #{tpu_custom_call.1} parent=1 // pred_check
      _
    $region15: #{tpu_custom_call.1} parent=1 // pred_check_branch
      %45 = sbr.rel (0) target = $region17
    $region16: #{tpu_custom_call.1} parent=1 // pred_region
      %47 = dma.done [#allocation3], 32
    $region17: #{tpu_custom_call.1} parent=1 // pred_fallthru
      _
    // Predicated region
    $region18: #{tpu_custom_call.1} parent=1 // pred_check
      _
    $region19: #{tpu_custom_call.1} parent=1 // pred_check_branch
      %49 = sbr.rel (0) target = $region21
    $region20: #{tpu_custom_call.1} parent=1 // pred_region
      %51 = dma.done [#allocation6], 256
    $region21: #{tpu_custom_call.1} parent=1 // pred_fallthru
      _
    // Predicated region
    $region22: #{tpu_custom_call.1} parent=1 // pred_check
      _
    $region23: #{tpu_custom_call.1} parent=1 // pred_check_branch
      %53 = sbr.rel (0) target = $region25
    $region24: #{tpu_custom_call.1} parent=1 // pred_region
      %55 = dma.done [#allocation6], 256
    $region25: #{tpu_custom_call.1} parent=1 // pred_fallthru
      _
    %v56 = vld [vmem:[#allocation5] sm:$0xff]
    %v57 = vld [vmem:[#allocation5 + $0x8] sm:$0xff]
    %v58 = vld [vmem:[#allocation7] sm:$0xff]
    %v59 = vld [vmem:[#allocation7 + $0x8] sm:$0xff]
    %v60 = vsub.f32 %v56, %v58
    %v61 = vsub.f32 %v57, %v59
    %v62 = vand.u32 2147483647, %v60
    %v63 = vand.u32 2147483647, %v61
    %v64 = vld [vmem:[#allocation2] sm:$0x3]
    %v65 = vunpack.c.l.bf16 %v64
    %v67 = vperm.slane %v65, 0
    %v68 = vperm.slane %v65, 2
    %v71 = vperm.slane %v67, 0
    %v72 = vperm.slane %v68, 0
    %v73 = vmul.f32 %v62, %v71
    %v74 = vmul.f32 %v63, %v72
    %v75 = vadd.f32 %v73, %v74
    %76 = vadd.xlane.f32.xlu0 %v75
    %v77 = vpop.xlane.xlu0 %76
    %vm78 = vcmask 7168
    %v79 = vsel %vm78, %v77, 0.0
    %80 = vadd.xlane.f32.xlu0 %v79
    %v81 = vpop.xlane.xlu0 %80
    %v82 = vrot.slane %v81, 4
    %v83 = vadd.f32 %v81, %v82
    %v84 = vrot.slane %v83, 2
    %v85 = vadd.f32 %v83, %v84
    %v86 = vrot.slane %v85, 1
    %v87 = vadd.f32 %v85, %v86
    %s88 = vtos %v87
    %v89 = vstv %s88
    %vm90 = vcmask 0
    %91 = vst.msk [vmem:[#allocation8] sm:$0x1] %vm90, %v89
    // Predicated region
    $region26: #{tpu_custom_call.1} parent=1 // pred_check
      _
    $region27: #{tpu_custom_call.1} parent=1 // pred_check_branch
      %93 = sbr.rel (0) target = $region29
    $region28: #{tpu_custom_call.1} parent=1 // pred_region
      %95 = vsyncadd [#allocation4], 0
      %s97 = sshll.u32 [#allocation8], 4
      %s98 = int_to_ptr.vmem [resolvable:$true] %s97
      %s99 = sshll.u32 %s3, 4
      %s100 = int_to_ptr.hbm [resolvable:$true] %s99
      %102 = dma.vmem_to_hbm [thread:$0]  %s98, 16, %s100, [#allocation4]
    $region29: #{tpu_custom_call.1} parent=1 // pred_fallthru
      _
    // Predicated region
    $region30: #{tpu_custom_call.1} parent=1 // pred_check
      _
    $region31: #{tpu_custom_call.1} parent=1 // pred_check_branch
      %104 = sbr.rel (0) target = $region33
    $region32: #{tpu_custom_call.1} parent=1 // pred_region
      %106 = dma.done [#allocation4], 16
    $region33: #{tpu_custom_call.1} parent=1 // pred_fallthru
      _
    %107 = vsyncpa [#allocation3], 1
    %108 = vsyncpa [#allocation6], 1
    %109 = vsyncpa [#allocation4], 1

</llo_original>
